<compile_context>
chip_gen: v6e
topology: v6e:2x2x1
jax: 0.10.0
libtpu: 0.0.40
codegen_flags: <defaults>
</compile_context>

<pallas_src>
from functools import partial

import jax
import jax.numpy as jnp
from jax.experimental import pallas as pl
from jax.experimental.pallas import tpu as pltpu


def _round_up(n: int, m: int) -> int:
    return (n + m - 1) // m * m


def gnf_kernel(x_ref, w1t_ref, b1_ref, w1ns_ref, o_ref):
    # x_ref   : (TB, Dp)  batch tile (lane-dense, Dp % 128 == 0)
    # w1t_ref : (Dp, Hp)  W1 pre-transposed -> no in-kernel transpose needed
    # b1_ref  : (1,  Hp)  first-layer bias (f32 row vector)
    # w1ns_ref: (Hp, Dp)  -(w2[:, None] * W1): w2 and output negation pre-folded
    # o_ref   : (TB, Dp)  output tile = -grad_x E(x)
    h = jnp.dot(x_ref[...], w1t_ref[...],
                preferred_element_type=jnp.float32) + b1_ref[...]     # MXU, f32 acc
    t = jnp.tanh(h)                                                   # EUP, f32
    s = 1.0 - t * t                                                   # VPU, f32
    g = jnp.dot(s.astype(w1ns_ref.dtype), w1ns_ref[...],
                preferred_element_type=jnp.float32)                   # MXU, f32 acc
    o_ref[...] = g.astype(o_ref.dtype)


@partial(jax.jit, static_argnames=("max_tile_b", "vmem_budget_bytes"))
def gnf_forward(x, w1, b1, w2, *, max_tile_b=1024,
                vmem_budget_bytes=12 * 1024 * 1024):
    """GNF(x) = -grad_x E(x) with a Pallas TPU kernel.

    x : (B, D), w1 : (H, D), b1 : (H,), w2 : (H,)
    """
    B, D = x.shape
    H = w1.shape[0]

    # ---- lane-dense padding (last dims -> multiples of 128) -----------------
    D_pad = _round_up(D, 128)
    H_pad = _round_up(H, 128)

    # ---- batch tile selection (sublane multiple of 8, VMEM-budgeted) --------
    b_sub = _round_up(B, 8)
    tb = min(_round_up(max_tile_b, 8), b_sub)
    # Prefer >= 2 grid steps so both v7x TensorCores get work.
    if b_sub // tb < 2 and b_sub >= 16:
        tb = _round_up(b_sub // 2, 8)

    itemsize_x = jnp.dtype(x.dtype).itemsize
    itemsize_w = jnp.dtype(w1.dtype).itemsize

    def vmem_estimate(t):
        io_tiles = 2 * t * D_pad * itemsize_x                 # x + out tile
        weights = 2 * D_pad * H_pad * itemsize_w + H_pad * 4  # W1t + W1ns + b1
        inter = 2 * t * H_pad * 4                             # h / s intermediates
        return 2 * (io_tiles + weights) + inter               # 2x for double-buffering

    while tb > 8 and vmem_estimate(tb) > vmem_budget_bytes:
        tb = max(8, _round_up(tb // 2, 8))

    B_pad = _round_up(b_sub, tb)

    # ---- build padded operands in the wrapper (fused under jit) -------------
    w1_f32 = w1.astype(jnp.float32)
    w2_f32 = w2.astype(jnp.float32)

    x_pad = jnp.zeros((B_pad, D_pad), dtype=x.dtype).at[:B, :D].set(x)
    w1t = jnp.zeros((D_pad, H_pad), dtype=w1.dtype).at[:D, :H].set(
        w1_f32.T.astype(w1.dtype))
    b1_row = jnp.zeros((1, H_pad), dtype=jnp.float32).at[0, :H].set(
        b1.astype(jnp.float32))
    # Fold w2 and the leading minus sign into the second-matmul weight.
    w1ns = jnp.zeros((H_pad, D_pad), dtype=w1.dtype).at[:H, :D].set(
        (-(w2_f32[:, None] * w1_f32)).astype(w1.dtype))

    # ---- cost estimate (advisory, for XLA scheduling) ------------------------
    cost = pl.CostEstimate(
        flops=2 * 2 * B_pad * H_pad * D_pad,
        transcendentals=B_pad * H_pad,
        bytes_accessed=(2 * B_pad * D_pad * itemsize_x
                        + 2 * D_pad * H_pad * itemsize_w
                        + H_pad * 4),
    )

    out = pl.pallas_call(
        gnf_kernel,
        out_shape=jax.ShapeDtypeStruct((B_pad, D_pad), x.dtype),
        grid_spec=pltpu.PrefetchScalarGridSpec(
            num_scalar_prefetch=0,
            grid=(B_pad // tb,),
            in_specs=[
                pl.BlockSpec((tb, D_pad), lambda i: (i, 0)),      # x tile
                pl.BlockSpec((D_pad, H_pad), lambda i: (0, 0)),   # W1^T (resident)
                pl.BlockSpec((1, H_pad), lambda i: (0, 0)),       # b1
                pl.BlockSpec((H_pad, D_pad), lambda i: (0, 0)),   # -(w2*W1) (resident)
            ],
            out_specs=pl.BlockSpec((tb, D_pad), lambda i: (i, 0)),
        ),
        compiler_params=pltpu.CompilerParams(
            dimension_semantics=("parallel",)),
        cost_estimate=cost,
    )(x_pad, w1t, b1_row, w1ns)

    return out[:B, :D]


def gnf_reference(x, w1, b1, w2, b2):
    """Pure-JAX reference using autodiff (mirrors torch.autograd.grad)."""
    def energy_sum(xx):
        h = jnp.tanh(xx @ w1.T + b1)     # (B, H)
        e = h @ w2 + b2                  # (B,)
        return e.sum()
    return -jax.grad(energy_sum)(x)


if __name__ == "__main__":
    key = jax.random.PRNGKey(0)
    kx, kw1, kb1, kw2, kx2 = jax.random.split(key, 5)

    # Small shapes consistent with a GNF over a 32-dim state with a 64-unit
    # hidden energy MLP.  (Wrapper pads D/H to 128 lanes and batch to tiles.)
    B, D, H = 8, 32, 64
    x = jax.random.normal(kx, (B, D), dtype=jnp.float32)

    # Deterministic energy MLP: Linear(D, H) -> tanh -> Linear(H, 1).
    w1 = 0.1 * jax.random.normal(kw1, (H, D), dtype=jnp.float32)
    b1 = 0.1 * jax.random.normal(kb1, (H,), dtype=jnp.float32)
    w2 = 0.1 * jax.random.normal(kw2, (H,), dtype=jnp.float32)
    b2 = jnp.float32(0.0)  # constant bias: drops out of the gradient

    out = gnf_forward(x, w1, b1, w2)
    out = jax.block_until_ready(out)
    ref = gnf_reference(x, w1, b1, w2, b2)
    assert out.shape == x.shape and out.dtype == x.dtype
    assert jnp.allclose(out, ref, rtol=1e-4, atol=1e-5), "mismatch vs autodiff ref"

    # Second check: non-multiple-of-8 batch exercises padding and a >=2-step grid.
    B2 = 24
    x2 = jax.random.normal(kx2, (B2, D), dtype=jnp.float32)
    out2 = jax.block_until_ready(gnf_forward(x2, w1, b1, w2))
    ref2 = gnf_reference(x2, w1, b1, w2, b2)
    assert out2.shape == (B2, D)
    assert jnp.allclose(out2, ref2, rtol=1e-4, atol=1e-5), "mismatch (padded batch)"

    print("KERNEL_OK")
</pallas_src>

<mosaic_0001>
module attributes {stable_mosaic.version = 11 : i64} {
  func.func @gnf_kernel(%arg0: i32, %arg1: memref<8x128xf32, #tpu.memory_space<vmem>>, %arg2: memref<128x128xf32, #tpu.memory_space<vmem>>, %arg3: memref<1x128xf32, #tpu.memory_space<vmem>>, %arg4: memref<128x128xf32, #tpu.memory_space<vmem>>, %arg5: memref<8x128xf32, #tpu.memory_space<vmem>>) attributes {dimension_semantics = [#tpu.dimension_semantics<parallel>], iteration_bounds = array<i64: 1>, scalar_prefetch = 0 : i64, scratch_operands = 0 : i64, tpu.core_type = #tpu.core_type<tc>, window_params = [{transform_indices = @transform_0, window_bounds = array<i64: 8, 128>}, {pipeline_mode = #tpu.pipeline_mode<synchronous>, transform_indices = @transform_1, window_bounds = array<i64: 128, 128>}, {pipeline_mode = #tpu.pipeline_mode<synchronous>, transform_indices = @transform_2, window_bounds = array<i64: 1, 128>}, {pipeline_mode = #tpu.pipeline_mode<synchronous>, transform_indices = @transform_3, window_bounds = array<i64: 128, 128>}, {transform_indices = @transform_4, window_bounds = array<i64: 8, 128>}]} {
    %c0 = arith.constant 0 : index
    %c0_0 = arith.constant 0 : index
    %0 = vector.load %arg1[%c0, %c0_0] : memref<8x128xf32, #tpu.memory_space<vmem>>, vector<8x128xf32>
    %c0_1 = arith.constant 0 : index
    %c0_2 = arith.constant 0 : index
    %1 = vector.load %arg2[%c0_1, %c0_2] : memref<128x128xf32, #tpu.memory_space<vmem>>, vector<128x128xf32>
    %cst = arith.constant dense<0.000000e+00> : vector<8x128xf32>
    %2 = tpu.matmul %0, %1, %cst {dimension_numbers = #tpu.dot_dimension_numbers<[1], [0], [0], [1], [0, 0, 1, 1], [], []>} : vector<8x128xf32>, vector<128x128xf32>, vector<8x128xf32> -> vector<8x128xf32>
    %c0_3 = arith.constant 0 : index
    %c0_4 = arith.constant 0 : index
    %3 = vector.load %arg3[%c0_3, %c0_4] : memref<1x128xf32, #tpu.memory_space<vmem>>, vector<1x128xf32>
    %4 = vector.broadcast %3 : vector<1x128xf32> to vector<8x128xf32>
    %5 = arith.addf %2, %4 : vector<8x128xf32>
    %6 = math.tanh %5 : vector<8x128xf32>
    %7 = arith.mulf %6, %6 : vector<8x128xf32>
    %cst_5 = arith.constant 1.000000e+00 : f32
    %8 = vector.broadcast %cst_5 : f32 to vector<8x128xf32>
    %9 = arith.subf %8, %7 : vector<8x128xf32>
    %c0_6 = arith.constant 0 : index
    %c0_7 = arith.constant 0 : index
    %10 = vector.load %arg4[%c0_6, %c0_7] : memref<128x128xf32, #tpu.memory_space<vmem>>, vector<128x128xf32>
    %cst_8 = arith.constant dense<0.000000e+00> : vector<8x128xf32>
    %11 = tpu.matmul %9, %10, %cst_8 {dimension_numbers = #tpu.dot_dimension_numbers<[1], [0], [0], [1], [0, 0, 1, 1], [], []>} : vector<8x128xf32>, vector<128x128xf32>, vector<8x128xf32> -> vector<8x128xf32>
    %c0_9 = arith.constant 0 : index
    %c0_10 = arith.constant 0 : index
    %12 = vector.load %arg5[%c0_9, %c0_10] : memref<8x128xf32, #tpu.memory_space<vmem>>, vector<8x128xf32>
    tpu.vector_store %arg5[%c0_9, %c0_10], %11 {strides = array<i32>} : memref<8x128xf32, #tpu.memory_space<vmem>>, vector<8x128xf32>,
    return
  }
  func.func @transform_0(%arg0: i32) -> (i32, i32) {
    %c0_i32 = arith.constant 0 : i32
    %c0_i32_0 = arith.constant 0 : i32
    return %arg0, %c0_i32 : i32, i32
  }
  func.func @transform_1(%arg0: i32) -> (i32, i32) {
    %c0_i32 = arith.constant 0 : i32
    %c0_i32_0 = arith.constant 0 : i32
    %c0_i32_1 = arith.constant 0 : i32
    return %c0_i32, %c0_i32_0 : i32, i32
  }
  func.func @transform_2(%arg0: i32) -> (i32, i32) {
    %c0_i32 = arith.constant 0 : i32
    %c0_i32_0 = arith.constant 0 : i32
    %c0_i32_1 = arith.constant 0 : i32
    return %c0_i32, %c0_i32_0 : i32, i32
  }
  func.func @transform_3(%arg0: i32) -> (i32, i32) {
    %c0_i32 = arith.constant 0 : i32
    %c0_i32_0 = arith.constant 0 : i32
    %c0_i32_1 = arith.constant 0 : i32
    return %c0_i32, %c0_i32_0 : i32, i32
  }
  func.func @transform_4(%arg0: i32) -> (i32, i32) {
    %c0_i32 = arith.constant 0 : i32
    %c0_i32_0 = arith.constant 0 : i32
    return %arg0, %c0_i32 : i32, i32
  }
}

</mosaic_0001>

<llo_original>
// kernel: gnf_forward.1
$region0: #{gnf_forward.1}
  #allocation0 [shape = 'u32[]', space=smem, size = 0x4, offset = 0x4, fixed_abs, tag = 'smem constant byte address 0x4 - core index']
  #allocation1 [shape = 'u32[144,128]{1,0:T(1,128)}', space=vmem, size = 0x12000, scoped, tag = 'internal scratch']
  %s0 = inlined_call_operand.vmem [shape: f32[8,128], index: 0, kind: input, shape index: {}]
  %s1 = inlined_call_operand.vmem [shape: f32[128,128], index: 1, kind: input, shape index: {}]
  %s2 = inlined_call_operand.vmem [shape: f32[1,128], index: 2, kind: input, shape index: {}]
  %s3 = inlined_call_operand.vmem [shape: f32[128,128], index: 3, kind: input, shape index: {}]
  %s4 = inlined_call_operand.hbm [shape: f32[8,128], index: 4, kind: output, shape index: {}]
  %s5 = sld [smem:[#allocation0]]
  $region26: #{gnf_forward.1} parent=0
    _
  %s7 = ssub.s32 1, %s5
  %s8 = scalar_select 0, %s7, %s5
  $region1: #{gnf_forward.1} parent=0
    #allocation2 [shape = 'u8[4096]{0}', space=vmem, size = 0x1000, scoped, tag = 'output window, operand 0, single buffered']
    #allocation3 [shape = 's32[1]{0}', space=sflag, size = 0x4, scoped, tag = 'scoped memory for gnf_forward.1']
    %9 = vsyncpa [#allocation3], 0
    // Predicated region
    $region2: #{gnf_forward.1} parent=1 // pred_check
      _
    $region3: #{gnf_forward.1} parent=1 // pred_check_branch
      %11 = sbr.rel (0) target = $region5
    $region4: #{gnf_forward.1} parent=1 // pred_region
      _
    $region5: #{gnf_forward.1} parent=1 // pred_fallthru
      _
    // Predicated region
    $region6: #{gnf_forward.1} parent=1 // pred_check
      _
    $region7: #{gnf_forward.1} parent=1 // pred_check_branch
      %13 = sbr.rel (0) target = $region9
    $region8: #{gnf_forward.1} parent=1 // pred_region
      _
    $region9: #{gnf_forward.1} parent=1 // pred_fallthru
      _
    // Predicated region
    $region10: #{gnf_forward.1} parent=1 // pred_check
      _
    $region11: #{gnf_forward.1} parent=1 // pred_check_branch
      %15 = sbr.rel (0) target = $region13
    $region12: #{gnf_forward.1} parent=1 // pred_region
      _
    $region13: #{gnf_forward.1} parent=1 // pred_fallthru
      _
    // Predicated region
    $region14: #{gnf_forward.1} parent=1 // pred_check
      _
    $region15: #{gnf_forward.1} parent=1 // pred_check_branch
      %17 = sbr.rel (0) target = $region17
    $region16: #{gnf_forward.1} parent=1 // pred_region
      _
    $region17: #{gnf_forward.1} parent=1 // pred_fallthru
      _
    %v18 = vld [vmem:[%s0] sm:$0xff]
    %v19 = vld [vmem:[%s1] sm:$0xff]
    %v20 = vld [vmem:[%s1 + $0x8] sm:$0xff]
    %v21 = vld [vmem:[%s1 + $0x10] sm:$0xff]
    %v22 = vld [vmem:[%s1 + $0x18] sm:$0xff]
    %v23 = vld [vmem:[%s1 + $0x20] sm:$0xff]
    %v24 = vld [vmem:[%s1 + $0x28] sm:$0xff]
    %v25 = vld [vmem:[%s1 + $0x30] sm:$0xff]
    %v26 = vld [vmem:[%s1 + $0x38] sm:$0xff]
    %v27 = vld [vmem:[%s1 + $0x40] sm:$0xff]
    %v28 = vld [vmem:[%s1 + $0x48] sm:$0xff]
    %v29 = vld [vmem:[%s1 + $0x50] sm:$0xff]
    %v30 = vld [vmem:[%s1 + $0x58] sm:$0xff]
    %v31 = vld [vmem:[%s1 + $0x60] sm:$0xff]
    %v32 = vld [vmem:[%s1 + $0x68] sm:$0xff]
    %v33 = vld [vmem:[%s1 + $0x70] sm:$0xff]
    %v34 = vld [vmem:[%s1 + $0x78] sm:$0xff]
    %v35 = vld [vmem:[%s2] sm:$0x1]
    %v37 = vlaneseq
    %v38 = vshrl.u32 %v37, 7
    %v39 = vsub.s32 0, %v38
    %v40 = vrot.slane %v35, %v39
    %42 = vmatprep.subr.mxu0 0.0
    %43 = vmatpush1.msra.mxu0 %v34
    %44 = vmatprep.subr.mxu0 0.0
    %45 = vmatpush1.msra.mxu0 %v33
    %46 = vmatprep.subr.mxu0 0.0
    %47 = vmatpush1.msra.mxu0 %v32
    %48 = vmatprep.subr.mxu0 0.0
    %49 = vmatpush1.msra.mxu0 %v31
    %50 = vmatprep.subr.mxu0 0.0
    %51 = vmatpush1.msra.mxu0 %v30
    %52 = vmatprep.subr.mxu0 0.0
    %53 = vmatpush1.msra.mxu0 %v29
    %54 = vmatprep.subr.mxu0 0.0
    %55 = vmatpush1.msra.mxu0 %v28
    %56 = vmatprep.subr.mxu0 0.0
    %57 = vmatpush1.msra.mxu0 %v27
    %58 = vmatprep.subr.mxu0 0.0
    %59 = vmatpush1.msra.mxu0 %v26
    %60 = vmatprep.subr.mxu0 0.0
    %61 = vmatpush1.msra.mxu0 %v25
    %62 = vmatprep.subr.mxu0 0.0
    %63 = vmatpush1.msra.mxu0 %v24
    %64 = vmatprep.subr.mxu0 0.0
    %65 = vmatpush1.msra.mxu0 %v23
    %66 = vmatprep.subr.mxu0 0.0
    %67 = vmatpush1.msra.mxu0 %v22
    %68 = vmatprep.subr.mxu0 0.0
    %69 = vmatpush1.msra.mxu0 %v21
    %70 = vmatprep.subr.mxu0 0.0
    %71 = vmatpush1.msra.mxu0 %v20
    %72 = vmatprep.subr.mxu0 0.0
    %73 = vmatpush1.msra.mxu0 %v19
    %74 = vmatprep.subr.mxu0 0.0
    %75 = vmatpush2.msra.mxu0 0.0
    %76 = vmatprep.subr.mxu0 0.0
    %77 = vmatpush2.msra.mxu0 0.0
    %78 = vmatprep.subr.mxu0 0.0
    %79 = vmatpush2.msra.mxu0 0.0
    %80 = vmatprep.subr.mxu0 0.0
    %81 = vmatpush2.msra.mxu0 0.0
    %82 = vmatprep.subr.mxu0 0.0
    %83 = vmatpush2.msra.mxu0 0.0
    %84 = vmatprep.subr.mxu0 0.0
    %85 = vmatpush2.msra.mxu0 0.0
    %86 = vmatprep.subr.mxu0 0.0
    %87 = vmatpush2.msra.mxu0 0.0
    %88 = vmatprep.subr.mxu0 0.0
    %89 = vmatpush2.msra.mxu0 0.0
    %90 = vmatprep.subr.mxu0 0.0
    %91 = vmatpush2.msra.mxu0 0.0
    %92 = vmatprep.subr.mxu0 0.0
    %93 = vmatpush2.msra.mxu0 0.0
    %94 = vmatprep.subr.mxu0 0.0
    %95 = vmatpush2.msra.mxu0 0.0
    %96 = vmatprep.subr.mxu0 0.0
    %97 = vmatpush2.msra.mxu0 0.0
    %98 = vmatprep.subr.mxu0 0.0
    %99 = vmatpush2.msra.mxu0 0.0
    %100 = vmatprep.subr.mxu0 0.0
    %101 = vmatpush2.msra.mxu0 0.0
    %102 = vmatprep.subr.mxu0 0.0
    %103 = vmatpush2.msra.mxu0 0.0
    %104 = vmatprep.subr.mxu0 0.0
    %105 = vmatpush2.msra.mxu0 0.0
    %106 = vmatprep.mubr.f32.mxu0 0.0
    %107 = vmatmul.mubr.f32.gmra.mxu0 %v18
    %v108 = vpop.f32.mrf.mxu0
    %v109 = vadd.f32 %v40, %v108
    %v110 = vpop.f32.mrf.mxu0
    %111 = vdwg.mxu0
    %v112 = vtanh.pop %v109
    %v113 = vmul.f32 %v112, %v112
    %v114 = vsub.f32 1.0, %v113
    %v115 = vld [vmem:[%s3] sm:$0xff]
    %v116 = vld [vmem:[%s3 + $0x8] sm:$0xff]
    %v117 = vld [vmem:[%s3 + $0x10] sm:$0xff]
    %v118 = vld [vmem:[%s3 + $0x18] sm:$0xff]
    %v119 = vld [vmem:[%s3 + $0x20] sm:$0xff]
    %v120 = vld [vmem:[%s3 + $0x28] sm:$0xff]
    %v121 = vld [vmem:[%s3 + $0x30] sm:$0xff]
    %v122 = vld [vmem:[%s3 + $0x38] sm:$0xff]
    %v123 = vld [vmem:[%s3 + $0x40] sm:$0xff]
    %v124 = vld [vmem:[%s3 + $0x48] sm:$0xff]
    %v125 = vld [vmem:[%s3 + $0x50] sm:$0xff]
    %v126 = vld [vmem:[%s3 + $0x58] sm:$0xff]
    %v127 = vld [vmem:[%s3 + $0x60] sm:$0xff]
    %v128 = vld [vmem:[%s3 + $0x68] sm:$0xff]
    %v129 = vld [vmem:[%s3 + $0x70] sm:$0xff]
    %v130 = vld [vmem:[%s3 + $0x78] sm:$0xff]
    %131 = vmatprep.subr.mxu0 0.0
    %132 = vmatpush1.msra.mxu0 %v130
    %133 = vmatprep.subr.mxu0 0.0
    %134 = vmatpush1.msra.mxu0 %v129
    %135 = vmatprep.subr.mxu0 0.0
    %136 = vmatpush1.msra.mxu0 %v128
    %137 = vmatprep.subr.mxu0 0.0
    %138 = vmatpush1.msra.mxu0 %v127
    %139 = vmatprep.subr.mxu0 0.0
    %140 = vmatpush1.msra.mxu0 %v126
    %141 = vmatprep.subr.mxu0 0.0
    %142 = vmatpush1.msra.mxu0 %v125
    %143 = vmatprep.subr.mxu0 0.0
    %144 = vmatpush1.msra.mxu0 %v124
    %145 = vmatprep.subr.mxu0 0.0
    %146 = vmatpush1.msra.mxu0 %v123
    %147 = vmatprep.subr.mxu0 0.0
    %148 = vmatpush1.msra.mxu0 %v122
    %149 = vmatprep.subr.mxu0 0.0
    %150 = vmatpush1.msra.mxu0 %v121
    %151 = vmatprep.subr.mxu0 0.0
    %152 = vmatpush1.msra.mxu0 %v120
    %153 = vmatprep.subr.mxu0 0.0
    %154 = vmatpush1.msra.mxu0 %v119
    %155 = vmatprep.subr.mxu0 0.0
    %156 = vmatpush1.msra.mxu0 %v118
    %157 = vmatprep.subr.mxu0 0.0
    %158 = vmatpush1.msra.mxu0 %v117
    %159 = vmatprep.subr.mxu0 0.0
    %160 = vmatpush1.msra.mxu0 %v116
    %161 = vmatprep.subr.mxu0 0.0
    %162 = vmatpush1.msra.mxu0 %v115
    %163 = vmatprep.subr.mxu0 0.0
    %164 = vmatpush2.msra.mxu0 0.0
    %165 = vmatprep.subr.mxu0 0.0
    %166 = vmatpush2.msra.mxu0 0.0
    %167 = vmatprep.subr.mxu0 0.0
    %168 = vmatpush2.msra.mxu0 0.0
    %169 = vmatprep.subr.mxu0 0.0
    %170 = vmatpush2.msra.mxu0 0.0
    %171 = vmatprep.subr.mxu0 0.0
    %172 = vmatpush2.msra.mxu0 0.0
    %173 = vmatprep.subr.mxu0 0.0
    %174 = vmatpush2.msra.mxu0 0.0
    %175 = vmatprep.subr.mxu0 0.0
    %176 = vmatpush2.msra.mxu0 0.0
    %177 = vmatprep.subr.mxu0 0.0
    %178 = vmatpush2.msra.mxu0 0.0
    %179 = vmatprep.subr.mxu0 0.0
    %180 = vmatpush2.msra.mxu0 0.0
    %181 = vmatprep.subr.mxu0 0.0
    %182 = vmatpush2.msra.mxu0 0.0
    %183 = vmatprep.subr.mxu0 0.0
    %184 = vmatpush2.msra.mxu0 0.0
    %185 = vmatprep.subr.mxu0 0.0
    %186 = vmatpush2.msra.mxu0 0.0
    %187 = vmatprep.subr.mxu0 0.0
    %188 = vmatpush2.msra.mxu0 0.0
    %189 = vmatprep.subr.mxu0 0.0
    %190 = vmatpush2.msra.mxu0 0.0
    %191 = vmatprep.subr.mxu0 0.0
    %192 = vmatpush2.msra.mxu0 0.0
    %193 = vmatprep.subr.mxu0 0.0
    %194 = vmatpush2.msra.mxu0 0.0
    %195 = vmatprep.mubr.f32.mxu0 0.0
    %196 = vmatmul.mubr.f32.gmra.mxu0 %v114
    %v197 = vpop.f32.mrf.mxu0
    %v198 = vadd.f32 0.0, %v197
    %v199 = vpop.f32.mrf.mxu0
    %200 = vdwg.mxu0
    %201 = vst [vmem:[#allocation2] sm:$0xff] %v198
    // Predicated region
    $region18: #{gnf_forward.1} parent=1 // pred_check
      _
    $region19: #{gnf_forward.1} parent=1 // pred_check_branch
      %203 = sbr.rel (0) target = $region21
    $region20: #{gnf_forward.1} parent=1 // pred_region
      %s205 = ssub.s32 128, 128
      %206 = vsyncadd [#allocation3], %s205
      %s208 = sshll.u32 [#allocation2], 4
      %s209 = int_to_ptr.vmem [resolvable:$true] %s208
      %211 = dma.vmem_to_hbm [thread:$0]  %s209, 128, %s4, [#allocation3]
    $region21: #{gnf_forward.1} parent=1 // pred_fallthru
      _
    // Predicated region
    $region22: #{gnf_forward.1} parent=1 // pred_check
      _
    $region23: #{gnf_forward.1} parent=1 // pred_check_branch
      %213 = sbr.rel (0) target = $region25
    $region24: #{gnf_forward.1} parent=1 // pred_region
      %214 = dma.done [#allocation3], 128
    $region25: #{gnf_forward.1} parent=1 // pred_fallthru
      _
    %215 = vsyncpa [#allocation3], 1

</llo_original>
